<compile_context>
chip_gen: v5e
topology: v5e:2x2
jax: 0.10.0
libtpu: 0.0.40
codegen_flags: <defaults>
</compile_context>

<pallas_src>
import functools
import math

import jax
import jax.numpy as jnp
from jax.experimental import pallas as pl
from jax.experimental.pallas import tpu as pltpu


# ----------------------------------------------------------------------------
# Kernel: pure add (pe broadcast over batch when it arrives as (T, 1, D))
# ----------------------------------------------------------------------------
def _pos_enc_add_kernel(x_ref, pe_ref, o_ref):
    o_ref[...] = (
        x_ref[...].astype(jnp.float32) + pe_ref[...].astype(jnp.float32)
    ).astype(o_ref.dtype)


# ----------------------------------------------------------------------------
# Tile selection
# ----------------------------------------------------------------------------
def _pick_seq_tile(S, row_bytes, target_bytes=4 << 20, split_threshold=2 << 20):
    """Biggest multiple-of-8 row count giving ~target_bytes x-blocks, but split
    into >= 2 grid steps for large inputs so v7x's two TensorCores both work."""
    rows = max(8, (target_bytes // max(row_bytes, 1)) // 8 * 8)
    if S * row_bytes > split_threshold:
        half = (S + 1) // 2
        half = ((half + 7) // 8) * 8          # round up -> 2 blocks still cover S
        rows = min(rows, half)
    if S <= rows:
        return S                              # full dim -> always a legal block
    return rows


# ----------------------------------------------------------------------------
# Wrapper
# ----------------------------------------------------------------------------
def positional_encoding(x, *, max_len=5000, donate_x=False):
    """x: (S, B, D) float array. Returns x + sinusoidal positional encoding."""
    S, B, D = x.shape
    assert S <= max_len, f"sequence length {S} exceeds max_len {max_len}"
    assert D % 2 == 0, "d_model must be even (as required by the PyTorch reference)"

    # pe[:S] built exactly like the PyTorch buffer (explicit sin / cos — exact
    # parity, no phase trick). Constant under jit; tiny compute either way.
    position = jnp.arange(S, dtype=jnp.float32)[:, None]                # (S, 1)
    div_term = jnp.exp(
        jnp.arange(0, D, 2, dtype=jnp.float32) * (-math.log(10000.0) / D)
    )                                                                   # (D//2,)
    ang = position * div_term                                           # (S, D//2)
    pe = jnp.stack([jnp.sin(ang), jnp.cos(ang)], axis=-1).reshape(S, D)  # interleave
    pe = pe.astype(x.dtype)

    itemsize = jnp.dtype(x.dtype).itemsize
    row_bytes = B * D * itemsize
    seq_tile = _pick_seq_tile(S, row_bytes)
    grid = (pl.cdiv(S, seq_tile),)

    use_bcast_3d = (B % 8 == 0) and (D % 128 == 0)
    if use_bcast_3d:
        # (seq_tile, B, D) blocks; pe broadcast over the batch sublane axis.
        x_in = x
        pe_in = pe[:, None, :]                                          # (S, 1, D)
        x_spec = pl.BlockSpec((seq_tile, B, D), lambda i: (i, 0, 0))
        pe_spec = pl.BlockSpec((seq_tile, 1, D), lambda i: (i, 0, 0))
        out_spec = pl.BlockSpec((seq_tile, B, D), lambda i: (i, 0, 0))
        out_shape = jax.ShapeDtypeStruct((S, B, D), x.dtype)
        pe_block_bytes = seq_tile * D * itemsize
    else:
        # Lane-flattened (S, B*D) blocks; pe pre-tiled over batch (lane = b*D + d).
        BD = B * D
        x_in = x.reshape(S, BD)                                         # free reshape
        pe_in = jnp.tile(pe, (1, B))                                    # (S, B*D)
        x_spec = pl.BlockSpec((seq_tile, BD), lambda i: (i, 0))
        pe_spec = pl.BlockSpec((seq_tile, BD), lambda i: (i, 0))
        out_spec = pl.BlockSpec((seq_tile, BD), lambda i: (i, 0))
        out_shape = jax.ShapeDtypeStruct((S, BD), x.dtype)
        pe_block_bytes = seq_tile * BD * itemsize

    x_block_bytes = seq_tile * B * D * itemsize
    # 2x (double-buffered) x-in + pe-in + out blocks, plus slack.
    vmem_limit = int(2 * (2 * x_block_bytes + pe_block_bytes)) + (4 << 20)

    extra = {}
    if donate_x:
        extra["input_output_aliases"] = {0: 0}

    out = pl.pallas_call(
        _pos_enc_add_kernel,
        out_shape=out_shape,
        grid=grid,
        in_specs=[x_spec, pe_spec],
        out_specs=out_spec,
        compiler_params=pltpu.CompilerParams(
            dimension_semantics=("parallel",),
            vmem_limit_bytes=vmem_limit,
        ),
        **extra,
    )(x_in, pe_in)

    return out if use_bcast_3d else out.reshape(S, B, D)


# ----------------------------------------------------------------------------
# Pure-JAX reference (mirrors the PyTorch buffer construction exactly)
# ----------------------------------------------------------------------------
def positional_encoding_reference(x, *, max_len=5000):
    S, B, D = x.shape
    position = jnp.arange(max_len, dtype=jnp.float32)[:, None]
    div_term = jnp.exp(
        jnp.arange(0, D, 2, dtype=jnp.float32) * (-math.log(10000.0) / D)
    )
    pe = jnp.zeros((max_len, D), jnp.float32)
    pe = pe.at[:, 0::2].set(jnp.sin(position * div_term))
    pe = pe.at[:, 1::2].set(jnp.cos(position * div_term))
    return x + pe[:S][:, None, :]                        # broadcast over batch


if __name__ == "__main__":
    key = jax.random.PRNGKey(0)
    S, B, D = 8, 2, 32          # (seq_len, batch, d_model) — PyTorch nn.Transformer layout
    x = jax.random.normal(key, (S, B, D), dtype=jnp.float32)

    fwd = jax.jit(functools.partial(positional_encoding, max_len=5000))
    out = jax.block_until_ready(fwd(x))

    ref = positional_encoding_reference(x, max_len=5000)
    assert out.shape == (S, B, D), out.shape
    assert jnp.all(jnp.isfinite(out))
    max_err = float(jnp.max(jnp.abs(out - ref)))
    assert max_err < 1e-4, f"mismatch vs reference: {max_err}"

    # Also exercise the 3-D broadcast path (B % 8 == 0, D % 128 == 0).
    S2, B2, D2 = 24, 8, 128
    x2 = jax.random.normal(jax.random.PRNGKey(1), (S2, B2, D2), dtype=jnp.float32)
    out2 = jax.block_until_ready(jax.jit(positional_encoding)(x2))
    ref2 = positional_encoding_reference(x2)
    max_err2 = float(jnp.max(jnp.abs(out2 - ref2)))
    assert max_err2 < 1e-4, f"mismatch vs reference (3-D path): {max_err2}"

    print("KERNEL_OK")
</pallas_src>

<mosaic_0001>
module attributes {stable_mosaic.version = 11 : i64} {
  func.func @_pos_enc_add_kernel(%arg0: i32, %arg1: memref<8x64xf32, #tpu.memory_space<vmem>>, %arg2: memref<8x64xf32, #tpu.memory_space<vmem>>, %arg3: memref<8x64xf32, #tpu.memory_space<vmem>>) attributes {dimension_semantics = [#tpu.dimension_semantics<parallel>], iteration_bounds = array<i64: 1>, scalar_prefetch = 0 : i64, scratch_operands = 0 : i64, tpu.core_type = #tpu.core_type<tc>, window_params = [{transform_indices = @transform_0, window_bounds = array<i64: 8, 64>}, {transform_indices = @transform_1, window_bounds = array<i64: 8, 64>}, {transform_indices = @transform_2, window_bounds = array<i64: 8, 64>}]} {
    %c0 = arith.constant 0 : index
    %c0_0 = arith.constant 0 : index
    %0 = vector.load %arg1[%c0, %c0_0] : memref<8x64xf32, #tpu.memory_space<vmem>>, vector<8x64xf32>
    %c0_1 = arith.constant 0 : index
    %c0_2 = arith.constant 0 : index
    %1 = vector.load %arg2[%c0_1, %c0_2] : memref<8x64xf32, #tpu.memory_space<vmem>>, vector<8x64xf32>
    %2 = arith.addf %0, %1 : vector<8x64xf32>
    %c0_3 = arith.constant 0 : index
    %c0_4 = arith.constant 0 : index
    %3 = vector.load %arg3[%c0_3, %c0_4] : memref<8x64xf32, #tpu.memory_space<vmem>>, vector<8x64xf32>
    tpu.vector_store %arg3[%c0_3, %c0_4], %2 {strides = array<i32>} : memref<8x64xf32, #tpu.memory_space<vmem>>, vector<8x64xf32>,
    return
  }
  func.func @transform_0(%arg0: i32) -> (i32, i32) {
    %c0_i32 = arith.constant 0 : i32
    %c0_i32_0 = arith.constant 0 : i32
    return %arg0, %c0_i32 : i32, i32
  }
  func.func @transform_1(%arg0: i32) -> (i32, i32) {
    %c0_i32 = arith.constant 0 : i32
    %c0_i32_0 = arith.constant 0 : i32
    return %arg0, %c0_i32 : i32, i32
  }
  func.func @transform_2(%arg0: i32) -> (i32, i32) {
    %c0_i32 = arith.constant 0 : i32
    %c0_i32_0 = arith.constant 0 : i32
    return %arg0, %c0_i32 : i32, i32
  }
}

</mosaic_0001>

<llo_original>
// kernel: tile.7
$region0: #{tile.7}
  %s0 = inlined_call_operand.vmem [shape: f32[8,2,32], index: 0, kind: input, shape index: {}]
  %s1 = inlined_call_operand.vmem [shape: f32[8,64], index: 1, kind: output, shape index: {}]
  $region1: #{tile.7} parent=0
    #allocation0 [shape = 'u8[32768]{0}', space=vmem, size = 0x8000, scoped, tag = 'scoped mem for input reshape']
    %s3 = ssub.s32 4, 1
    %s4 = scalar_lea.vmem %s0, 14
    %v5 = vld [vmem:[%s4] sm:%s3]
    %s6 = scalar_lea.vmem [#allocation0], 56
    %7 = vst [vmem:[%s6] sm:%s3] %v5
    %s8 = scalar_lea.vmem %s0, 12
    %v9 = vld [vmem:[%s8] sm:%s3]
    %s10 = scalar_lea.vmem [#allocation0], 48
    %11 = vst [vmem:[%s10] sm:%s3] %v9
    %s12 = scalar_lea.vmem %s0, 10
    %v13 = vld [vmem:[%s12] sm:%s3]
    %s14 = scalar_lea.vmem [#allocation0], 40
    %15 = vst [vmem:[%s14] sm:%s3] %v13
    %s16 = scalar_lea.vmem %s0, 8
    %v17 = vld [vmem:[%s16] sm:%s3]
    %s18 = scalar_lea.vmem [#allocation0], 32
    %19 = vst [vmem:[%s18] sm:%s3] %v17
    %s20 = scalar_lea.vmem %s0, 6
    %v21 = vld [vmem:[%s20] sm:%s3]
    %s22 = scalar_lea.vmem [#allocation0], 24
    %23 = vst [vmem:[%s22] sm:%s3] %v21
    %s24 = scalar_lea.vmem %s0, 4
    %v25 = vld [vmem:[%s24] sm:%s3]
    %s26 = scalar_lea.vmem [#allocation0], 16
    %27 = vst [vmem:[%s26] sm:%s3] %v25
    %s28 = scalar_lea.vmem %s0, 2
    %v29 = vld [vmem:[%s28] sm:%s3]
    %s30 = scalar_lea.vmem [#allocation0], 8
    %31 = vst [vmem:[%s30] sm:%s3] %v29
    %v32 = vld [vmem:[%s0] sm:%s3]
    %33 = vst [vmem:[#allocation0] sm:%s3] %v32
    %v34 = vld [vmem:[#allocation0] ss:$8 sm:$0xf]
    %v35 = vld [vmem:[#allocation0] ss:$8 sm:$0xf0]
    %vm36 = vcmask 1047556
    %v37 = vsel %vm36, %v35, %v34
    %vm38 = vcmask 261120
    %39 = vst.msk [vmem:[%s1] sm:$0xff] %vm38, %v37
    %s40 = scalar_lea.vmem [#allocation0], 1
    %v41 = vld [vmem:[%s40] ss:$8 sm:$0xf]
    %s42 = scalar_lea.vmem [#allocation0], 1
    %v43 = vld [vmem:[%s42] ss:$8 sm:$0xf0]
    %vm44 = vcmask 1047556
    %v45 = vsel %vm44, %v43, %v41
    %46 = vrot.lane.b32.xlu0 %v45, 32
    %v47 = vpop.permute.xlu0 %46
    %vm48 = vcmask 523520
    %49 = vst.msk [vmem:[%s1] sm:$0xff] %vm48, %v47

// kernel: positional_encoding.1
$region0: #{positional_encoding.1}
  #allocation0 [shape = 'u32[]', space=smem, size = 0x4, offset = 0x4, fixed_abs, tag = 'smem constant byte address 0x4 - core index']
  #allocation1 [shape = 'u32[72,128]{1,0:T(1,128)}', space=vmem, size = 0x9000, scoped, tag = 'internal scratch']
  %s0 = inlined_call_operand.vmem [shape: f32[8,64], index: 0, kind: input, shape index: {}]
  %s1 = inlined_call_operand.vmem [shape: f32[8,64], index: 1, kind: input, shape index: {}]
  %s2 = inlined_call_operand.vmem [shape: f32[8,64], index: 2, kind: output, shape index: {}]
  %s3 = sld [smem:[#allocation0]]
  $region18: #{positional_encoding.1} parent=0
    _
  %s5 = ssub.s32 1, %s3
  %s6 = scalar_select 0, %s5, %s3
  // Predicated region
  $region2: #{positional_encoding.1} parent=0 // pred_check
    _
  $region3: #{positional_encoding.1} parent=0 // pred_check_branch
    %8 = sbr.rel (0) target = $region5
  $region4: #{positional_encoding.1} parent=0 // pred_region
    _
  $region5: #{positional_encoding.1} parent=0 // pred_fallthru
    _
  // Predicated region
  $region6: #{positional_encoding.1} parent=0 // pred_check
    _
  $region7: #{positional_encoding.1} parent=0 // pred_check_branch
    %10 = sbr.rel (0) target = $region9
  $region8: #{positional_encoding.1} parent=0 // pred_region
    _
  $region9: #{positional_encoding.1} parent=0 // pred_fallthru
    _
  %v11 = vld [vmem:[%s0] sm:$0xff]
  %v12 = vld [vmem:[%s1] sm:$0xff]
  %v13 = vadd.f32 %v11, %v12
  %vm14 = vcmask 523264
  %15 = vst.msk [vmem:[%s2] sm:$0xff] %vm14, %v13
  // Predicated region
  $region10: #{positional_encoding.1} parent=0 // pred_check
    _
  $region11: #{positional_encoding.1} parent=0 // pred_check_branch
    %17 = sbr.rel (0) target = $region13
  $region12: #{positional_encoding.1} parent=0 // pred_region
    _
  $region13: #{positional_encoding.1} parent=0 // pred_fallthru
    _
  // Predicated region
  $region14: #{positional_encoding.1} parent=0 // pred_check
    _
  $region15: #{positional_encoding.1} parent=0 // pred_check_branch
    %19 = sbr.rel (0) target = $region17
  $region16: #{positional_encoding.1} parent=0 // pred_region
    _
  $region17: #{positional_encoding.1} parent=0 // pred_fallthru
    _

</llo_original>
